<compile_context>
chip_gen: v7x
topology: tpu7x:2x2x1
jax: 0.10.0
libtpu: 0.0.40
codegen_flags: <defaults>
</compile_context>

<pallas_src>
import jax
import jax.numpy as jnp
import numpy as np
from jax.experimental import pallas as pl
from jax.experimental.pallas import tpu as pltpu


D_IN = 1024
D_OUT = 1024
TN = 512          # 2 output tiles: low per-step overhead, and v7x gets 1 tile per TC


# ---------------------------------------------------------------------------
# Kernel: one output-feature tile of the 1024x1024 linear layer.
# ---------------------------------------------------------------------------
def _linear_kernel(x_ref, w_ref, sb_ref, o_ref):
    # x_ref : (B, D_IN)   f32  -- resident across grid steps (constant index_map)
    # w_ref : (D_IN, TN)  int8 -- per-output-channel quantized weight tile
    # sb_ref: (2, TN)     f32  -- row 0 = dequant scale, row 1 = bias
    # o_ref : (B, TN)     f32
    x = x_ref[...].astype(jnp.bfloat16)      # in-kernel cast (VPU, hidden under DMA)
    w = w_ref[...].astype(jnp.bfloat16)      # int8 -> bf16 dequant (|q| <= 127 exact)
    acc = jnp.dot(x, w, preferred_element_type=jnp.float32)   # MXU, f32 accumulate
    o_ref[...] = acc * sb_ref[0:1, :] + sb_ref[1:2, :]


# ---------------------------------------------------------------------------
# Parameters (PyTorch-equivalent layout) + fold into kernel layout (glue).
# ---------------------------------------------------------------------------
def init_params(key, T=10):
    """Deterministic synthetic parameters matching DenoisingDiffusionModelLinear."""
    k_w, k_b, k_e = jax.random.split(key, 3)
    bound = 1.0 / np.sqrt(D_IN)
    # nn.Linear(1024, 1024): weight (out, in), bias (out,)  -- PyTorch layout.
    w_pt = jax.random.uniform(k_w, (D_OUT, D_IN), jnp.float32, -bound, bound)
    b_pt = jax.random.uniform(k_b, (D_OUT,), jnp.float32, -bound, bound)
    # t_embedding table exists on the module but is dead code in forward.
    emb = jax.random.normal(k_e, (T, 128), jnp.float32)
    return {"linear_w": w_pt, "linear_b": b_pt, "t_embedding": emb}


def fold_params(params):
    """Kernel layout: int8 weight (in, out) + fused (2, out) f32 [scale; bias]."""
    w = jnp.transpose(params["linear_w"])                       # (in, out) f32
    absmax = jnp.max(jnp.abs(w), axis=0, keepdims=True)         # (1, out)
    scale = jnp.maximum(absmax, 1e-30) / 127.0                  # per-output-channel
    w_q = jnp.round(w / scale).astype(jnp.int8)                 # (in, out) int8
    bias = params["linear_b"].reshape(1, D_OUT).astype(jnp.float32)
    scale_bias = jnp.concatenate([scale.astype(jnp.float32), bias], axis=0)  # (2, out)
    return w_q, scale_bias


# ---------------------------------------------------------------------------
# Wrapper: layout/dtype glue + pallas_call plumbing.
# ---------------------------------------------------------------------------
@jax.jit
def denoising_diffusion_linear(t, x, w_q, scale_bias):
    del t  # timestep embedding is dead code w.r.t. the returned value
    B = x.shape[0]

    cost = pl.CostEstimate(
        flops=2 * B * D_IN * D_OUT,
        transcendentals=0,
        bytes_accessed=(B * D_IN * 4            # activations (f32 in)
                        + D_IN * D_OUT * 1      # int8 weight
                        + 2 * D_OUT * 4         # scale + bias
                        + B * D_OUT * 4),       # f32 output
    )

    out = pl.pallas_call(
        _linear_kernel,
        out_shape=jax.ShapeDtypeStruct((B, D_OUT), jnp.float32),
        grid=(D_OUT // TN,),
        in_specs=[
            pl.BlockSpec((B, D_IN), lambda n: (0, 0)),    # activations (resident, 1 DMA)
            pl.BlockSpec((D_IN, TN), lambda n: (0, n)),   # int8 weight tile
            pl.BlockSpec((2, TN), lambda n: (0, n)),      # [scale; bias] tile
        ],
        out_specs=pl.BlockSpec((B, TN), lambda n: (0, n)),
        compiler_params=pltpu.CompilerParams(
            dimension_semantics=("parallel",),            # v7x: 1 tile per TensorCore
        ),
        cost_estimate=cost,
    )(x, w_q, scale_bias)
    return out


# ---------------------------------------------------------------------------
if __name__ == "__main__":
    key = jax.random.PRNGKey(0)
    k_x, k_t, k_p = jax.random.split(key, 3)

    B, T = 2, 10
    x = jax.random.normal(k_x, (B, D_IN), jnp.float32)          # (B, 1024)
    t = jax.random.randint(k_t, (), 0, T, dtype=jnp.int32)      # scalar timestep

    params = init_params(k_p, T=T)
    w_q, scale_bias = fold_params(params)

    out = denoising_diffusion_linear(t, x, w_q, scale_bias)
    out = jax.block_until_ready(out)

    # Reference (f32, PyTorch nn.Linear semantics): x2 = x @ W^T + b
    ref = x @ params["linear_w"].T + params["linear_b"]

    assert out.shape == (B, D_OUT), out.shape
    assert bool(jnp.all(jnp.isfinite(out)))
    max_err = float(jnp.max(jnp.abs(out - ref)))
    assert bool(jnp.allclose(out, ref, atol=1e-1, rtol=5e-2)), max_err
    print("KERNEL_OK")
</pallas_src>

<mosaic_0001>
module attributes {stable_mosaic.version = 11 : i64} {
  func.func @_linear_kernel(%arg0: i32, %arg1: memref<2x1024xf32, #tpu.memory_space<vmem>>, %arg2: memref<1024x512xi8, #tpu.memory_space<vmem>>, %arg3: memref<2x512xf32, #tpu.memory_space<vmem>>, %arg4: memref<2x512xf32, #tpu.memory_space<vmem>>) attributes {dimension_semantics = [#tpu.dimension_semantics<parallel>], iteration_bounds = array<i64: 2>, scalar_prefetch = 0 : i64, scratch_operands = 0 : i64, tpu.core_type = #tpu.core_type<tc>, window_params = [{pipeline_mode = #tpu.pipeline_mode<synchronous>, transform_indices = @transform_0, window_bounds = array<i64: 2, 1024>}, {transform_indices = @transform_1, window_bounds = array<i64: 1024, 512>}, {transform_indices = @transform_2, window_bounds = array<i64: 2, 512>}, {transform_indices = @transform_3, window_bounds = array<i64: 2, 512>}]} {
    %c0 = arith.constant 0 : index
    %c0_0 = arith.constant 0 : index
    %0 = vector.load %arg1[%c0, %c0_0] : memref<2x1024xf32, #tpu.memory_space<vmem>>, vector<2x1024xf32>
    %1 = arith.truncf %0 : vector<2x1024xf32> to vector<2x1024xbf16>
    %c0_1 = arith.constant 0 : index
    %c0_2 = arith.constant 0 : index
    %2 = vector.load %arg2[%c0_1, %c0_2] : memref<1024x512xi8, #tpu.memory_space<vmem>>, vector<1024x512xi8>
    %3 = arith.sitofp %2 : vector<1024x512xi8> to vector<1024x512xbf16>
    %cst = arith.constant dense<0.000000e+00> : vector<2x512xf32>
    %4 = tpu.matmul %1, %3, %cst {dimension_numbers = #tpu.dot_dimension_numbers<[1], [0], [0], [1], [0, 0, 1, 1], [], []>} : vector<2x1024xbf16>, vector<1024x512xbf16>, vector<2x512xf32> -> vector<2x512xf32>
    %c0_3 = arith.constant 0 : index
    %c0_4 = arith.constant 0 : index
    %5 = vector.load %arg3[%c0_3, %c0_4] : memref<2x512xf32, #tpu.memory_space<vmem>>, vector<1x512xf32>
    %6 = vector.broadcast %5 : vector<1x512xf32> to vector<2x512xf32>
    %7 = arith.mulf %4, %6 : vector<2x512xf32>
    %c1 = arith.constant 1 : index
    %c0_5 = arith.constant 0 : index
    %8 = vector.load %arg3[%c1, %c0_5] : memref<2x512xf32, #tpu.memory_space<vmem>>, vector<1x512xf32>
    %9 = vector.broadcast %8 : vector<1x512xf32> to vector<2x512xf32>
    %10 = arith.addf %7, %9 : vector<2x512xf32>
    %c0_6 = arith.constant 0 : index
    %c0_7 = arith.constant 0 : index
    %11 = vector.load %arg4[%c0_6, %c0_7] : memref<2x512xf32, #tpu.memory_space<vmem>>, vector<2x512xf32>
    tpu.vector_store %arg4[%c0_6, %c0_7], %10 {strides = array<i32>} : memref<2x512xf32, #tpu.memory_space<vmem>>, vector<2x512xf32>,
    return
  }
  func.func @transform_0(%arg0: i32) -> (i32, i32) {
    %c0_i32 = arith.constant 0 : i32
    %c0_i32_0 = arith.constant 0 : i32
    %c0_i32_1 = arith.constant 0 : i32
    return %c0_i32, %c0_i32_0 : i32, i32
  }
  func.func @transform_1(%arg0: i32) -> (i32, i32) {
    %c0_i32 = arith.constant 0 : i32
    %c0_i32_0 = arith.constant 0 : i32
    return %c0_i32, %arg0 : i32, i32
  }
  func.func @transform_2(%arg0: i32) -> (i32, i32) {
    %c0_i32 = arith.constant 0 : i32
    %c0_i32_0 = arith.constant 0 : i32
    return %c0_i32, %arg0 : i32, i32
  }
  func.func @transform_3(%arg0: i32) -> (i32, i32) {
    %c0_i32 = arith.constant 0 : i32
    %c0_i32_0 = arith.constant 0 : i32
    return %c0_i32, %arg0 : i32, i32
  }
}

</mosaic_0001>

<llo_original>
// kernel: denoising_diffusion_linear.1
$region0: #{denoising_diffusion_linear.1}
  #allocation0 [shape = 'u32[]', space=smem, size = 0x4, offset = 0x4, fixed_abs, tag = 'smem constant byte address 0x4 - core index']
  #allocation1 [shape = 'u32[144,128]{1,0:T(1,128)}', space=vmem, size = 0x12000, scoped, tag = 'internal scratch']
  %s0 = inlined_call_operand.hbm [shape: f32[2,1024], index: 0, kind: input, shape index: {}]
  %s1 = inlined_call_operand.hbm [shape: s8[1024,1024], index: 1, kind: input, shape index: {}]
  %s2 = inlined_call_operand.hbm [shape: f32[2,1024], index: 2, kind: input, shape index: {}]
  %s3 = inlined_call_operand.hbm [shape: f32[2,1024], index: 3, kind: output, shape index: {}]
  %s4 = sld [smem:[#allocation0]]
  $region57: #{denoising_diffusion_linear.1} parent=0
    _
  %s6 = ssub.s32 1, %s4
  %s7 = scalar_select 0, %s6, %s4
  $region1: #{denoising_diffusion_linear.1} parent=0
    #allocation2 [shape = 'u8[8192]{0}', space=vmem, size = 0x2000, scoped, tag = 'input window, operand 0, single buffered']
    #allocation3 [shape = 's32[2]{0}', space=sflag, size = 0x8, scoped, tag = 'scoped memory for denoising_diffusion_linear.1']
    #allocation4 [shape = 's32[2]{0}', space=sflag, size = 0x8, scoped, tag = 'scoped memory for denoising_diffusion_linear.1']
    #allocation5 [shape = 'u8[1048576]{0}', space=vmem, size = 0x100000, scoped, tag = 'input window, operand 1']
    #allocation6 [shape = 's32[2]{0}', space=sflag, size = 0x8, scoped, tag = 'scoped memory for denoising_diffusion_linear.1']
    #allocation7 [shape = 'u8[8192]{0}', space=vmem, size = 0x2000, scoped, tag = 'input window, operand 2']
    #allocation8 [shape = 'u8[8192]{0}', space=vmem, size = 0x2000, scoped, tag = 'output window, operand 0']
    %8 = vsyncpa [#allocation3], 0
    %9 = vsyncpa [#allocation6], 0
    %s10 = scalar_lea.sflag [#allocation6], 1
    %11 = vsyncpa %s10, 0
    %12 = vsyncpa [#allocation4], 0
    %s13 = scalar_lea.sflag [#allocation4], 1
    %14 = vsyncpa %s13, 0
    loop: start=0, step=1, limit=4
    $region2: #{denoising_diffusion_linear.1} parent=1 // loop_pre_header
      _
    $region3: #{denoising_diffusion_linear.1} parent=1 // loop_header
      %s16 = sphi 0, %s20
      %p17 = scmp.ge.s32.totalorder %s16, 4
      %s24 = sphi 0, %s24
      %s26 = sphi 0, %s24
      %s27 = sphi 0, %s26
      %s41 = sphi 0, %s27
      %s47 = sphi 0, %s49
      %s50 = sphi 0, %s47
      %s51 = sphi 0, %s50
      %s67 = sphi 0, %s51
      %s73 = sphi 0, %s75
      %s76 = sphi 0, %s73
      %s77 = sphi 0, %s76
      %s93 = sphi 0, %s77
      %s99 = sphi 0, %s101
      %s102 = sphi 0, %s99
      %s103 = sphi 0, %s102
      %s119 = sphi 0, %s103
    $region4: #{denoising_diffusion_linear.1} parent=1 // loop_header_branch
      %19 = sbr.rel (%p17) target = $region8
    $region5: #{denoising_diffusion_linear.1} parent=1 // loop_body
      %s21 = ssub.s32 %s16, 1
      %s22 = ssub.s32 %s16, 2
      %s23 = sadd.s32 %s16, 1
      %s25 = sadd.s32 %s24, 1
      %p28 = scmp.eq.s32.totalorder %s16, 1
      %p29 = scmp.ne.s32.totalorder %s24, %s26
      %p30 = scmp.eq.s32.totalorder %s16, 0
      %p31 = por %p29, %p30
      %p32 = scmp.ne.s32.totalorder %s24, %s26
      %p33 = scmp.eq.s32.totalorder %s21, 1
      %p34 = por %p32, %p33
      %p35 = scmp.ne.s32.totalorder %s26, %s27
      %p36 = scmp.eq.s32.totalorder %s21, 0
      %p37 = por %p35, %p36
      %p38 = scmp.ne.s32.totalorder %s26, %s27
      %p39 = scmp.eq.s32.totalorder %s22, 1
      %p40 = por %p38, %p39
      %p42 = scmp.ne.s32.totalorder %s27, %s41
      %p43 = scmp.eq.s32.totalorder %s22, 0
      %p44 = por %p42, %p43
      %s45 = ssub.s32 %s16, %s23
      %p46 = scmp.eq.s32.totalorder %s45, 0
      %s48 = sadd.s32 %s47, 1
      %s49 = scalar_select %p46, %s47, %s48
      %p52 = pneg %p46
      %p53 = scmp.eq.s32.totalorder %s16, 1
      %p54 = por %p52, %p53
      %p55 = scmp.ne.s32.totalorder %s47, %s50
      %p56 = scmp.eq.s32.totalorder %s16, 0
      %p57 = por %p55, %p56
      %p58 = scmp.ne.s32.totalorder %s47, %s50
      %p59 = scmp.eq.s32.totalorder %s21, 1
      %p60 = por %p58, %p59
      %p61 = scmp.ne.s32.totalorder %s50, %s51
      %p62 = scmp.eq.s32.totalorder %s21, 0
      %p63 = por %p61, %p62
      %p64 = scmp.ne.s32.totalorder %s50, %s51
      %p65 = scmp.eq.s32.totalorder %s22, 1
      %p66 = por %p64, %p65
      %p68 = scmp.ne.s32.totalorder %s51, %s67
      %p69 = scmp.eq.s32.totalorder %s22, 0
      %p70 = por %p68, %p69
      %s71 = ssub.s32 %s16, %s23
      %p72 = scmp.eq.s32.totalorder %s71, 0
      %s74 = sadd.s32 %s73, 1
      %s75 = scalar_select %p72, %s73, %s74
      %p78 = pneg %p72
      %p79 = scmp.eq.s32.totalorder %s16, 1
      %p80 = por %p78, %p79
      %p81 = scmp.ne.s32.totalorder %s73, %s76
      %p82 = scmp.eq.s32.totalorder %s16, 0
      %p83 = por %p81, %p82
      %p84 = scmp.ne.s32.totalorder %s73, %s76
      %p85 = scmp.eq.s32.totalorder %s21, 1
      %p86 = por %p84, %p85
      %p87 = scmp.ne.s32.totalorder %s76, %s77
      %p88 = scmp.eq.s32.totalorder %s21, 0
      %p89 = por %p87, %p88
      %p90 = scmp.ne.s32.totalorder %s76, %s77
      %p91 = scmp.eq.s32.totalorder %s22, 1
      %p92 = por %p90, %p91
      %p94 = scmp.ne.s32.totalorder %s77, %s93
      %p95 = scmp.eq.s32.totalorder %s22, 0
      %p96 = por %p94, %p95
      %s97 = ssub.s32 %s16, %s23
      %p98 = scmp.eq.s32.totalorder %s97, 0
      %s100 = sadd.s32 %s99, 1
      %s101 = scalar_select %p98, %s99, %s100
      %p104 = pneg %p98
      %p105 = scmp.eq.s32.totalorder %s16, 1
      %p106 = por %p104, %p105
      %p107 = scmp.ne.s32.totalorder %s99, %s102
      %p108 = scmp.eq.s32.totalorder %s16, 0
      %p109 = por %p107, %p108
      %p110 = scmp.ne.s32.totalorder %s99, %s102
      %p111 = scmp.eq.s32.totalorder %s21, 1
      %p112 = por %p110, %p111
      %p113 = scmp.ne.s32.totalorder %s102, %s103
      %p114 = scmp.eq.s32.totalorder %s21, 0
      %p115 = por %p113, %p114
      %p116 = scmp.ne.s32.totalorder %s102, %s103
      %p117 = scmp.eq.s32.totalorder %s22, 1
      %p118 = por %p116, %p117
      %p120 = scmp.ne.s32.totalorder %s103, %s119
      %p121 = scmp.eq.s32.totalorder %s22, 0
      %p122 = por %p120, %p121
      %p123 = scmp.le.s32.totalorder 1, %s16
      %p124 = scmp.lt.s32.totalorder %s16, 3
      %p125 = pnand %p123, %p124
      %p126 = pneg %p125
      // Predicated region
      $region9: #{denoising_diffusion_linear.1} parent=5 // pred_check
        _
      $region10: #{denoising_diffusion_linear.1} parent=5 // pred_check_branch
        %128 = sbr.rel (%p125) target = $region12
      $region11: #{denoising_diffusion_linear.1} parent=5 // pred_region
        %s129 = ssub.s32 %s16, 1
        // Predicated region
        $region13: #{denoising_diffusion_linear.1} parent=11 // pred_check
          %p130 = pneg %p37
        $region14: #{denoising_diffusion_linear.1} parent=11 // pred_check_branch
          %132 = sbr.rel (%p130) target = $region16
        $region15: #{denoising_diffusion_linear.1} parent=11 // pred_region
          %s134 = ssub.s32 256, 256
          %135 = vsyncadd [#allocation3], %s134
          %s137 = sshll.u32 [#allocation2], 4
          %s138 = int_to_ptr.vmem [resolvable:$true] %s137
          %140 = dma.hbm_to_vmem [thread:$0]  %s0, 256, %s138, [#allocation3]
        $region16: #{denoising_diffusion_linear.1} parent=11 // pred_fallthru
          _
      $region12: #{denoising_diffusion_linear.1} parent=5 // pred_fallthru
        _
      %p141 = scmp.lt.s32.totalorder %s16, 2
      // Predicated region
      $region17: #{denoising_diffusion_linear.1} parent=5 // pred_check
        %p142 = pneg %p141
      $region18: #{denoising_diffusion_linear.1} parent=5 // pred_check_branch
        %144 = sbr.rel (%p142) target = $region20
      $region19: #{denoising_diffusion_linear.1} parent=5 // pred_region
        // Predicated region
        $region21: #{denoising_diffusion_linear.1} parent=19 // pred_check
          %p145 = pneg %p57
        $region22: #{denoising_diffusion_linear.1} parent=19 // pred_check_branch
          %147 = sbr.rel (%p145) target = $region24
        $region23: #{denoising_diffusion_linear.1} parent=19 // pred_region
          %s148 = sand.u32 %s16, 1
          %s149 = scalar_lea.sflag [#allocation6], %s148
          %s150 = sand.u32 %s47, 1
          %s151 = smul.addr %s150, 1024
          %s152 = scalar_lea.vmem [#allocation5], %s151
          %s153 = smul.u32 4, %s16
          %s155 = ssub.s32 16384, 16384
          %156 = vsyncadd %s149, %s155
          %s157 = smul.addr %s153, 128
          %s158 = scalar_lea.hbm %s1, %s157
          %s159 = sshll.u32 %s152, 4
          %s160 = int_to_ptr.vmem [resolvable:$true] %s159
          %165 = dma.hbm_to_vmem [thread:$0]  %s158, 16384, %s160, %s149, 1024, 512, 32
        $region24: #{denoising_diffusion_linear.1} parent=19 // pred_fallthru
          _
        // Predicated region
        $region25: #{denoising_diffusion_linear.1} parent=19 // pred_check
          %p166 = pneg %p83
        $region26: #{denoising_diffusion_linear.1} parent=19 // pred_check_branch
          %168 = sbr.rel (%p166) target = $region28
        $region27: #{denoising_diffusion_linear.1} parent=19 // pred_region
          %s169 = sand.u32 %s16, 1
          %s170 = scalar_lea.sflag [#allocation6], %s169
          %s171 = sand.u32 %s73, 1
          %s172 = smul.addr %s171, 8
          %s173 = scalar_lea.vmem [#allocation7], %s172
          %s174 = smul.u32 4, %s16
          %s176 = ssub.s32 128, 128
          %177 = vsyncadd %s170, %s176
          %s178 = smul.addr %s174, 32
          %s179 = scalar_lea.hbm %s2, %s178
          %s181 = sshll.u32 %s173, 4
          %s182 = int_to_ptr.vmem [resolvable:$true] %s181
          %184 = dma.hbm_to_vmem [thread:$0]  %s179, 128, %s182, %s170
        $region28: #{denoising_diffusion_linear.1} parent=19 // pred_fallthru
          _
      $region20: #{denoising_diffusion_linear.1} parent=5 // pred_fallthru
        _
      %p185 = scmp.le.s32.totalorder 1, %s16
      %p186 = scmp.lt.s32.totalorder %s16, 3
      %p187 = pnand %p185, %p186
      %p188 = pneg %p187
      // Predicated region
      $region29: #{denoising_diffusion_linear.1} parent=5 // pred_check
        _
      $region30: #{denoising_diffusion_linear.1} parent=5 // pred_check_branch
        %190 = sbr.rel (%p187) target = $region32
      $region31: #{denoising_diffusion_linear.1} parent=5 // pred_region
        %s191 = ssub.s32 %s16, 1
        // Predicated region
        $region33: #{denoising_diffusion_linear.1} parent=31 // pred_check
          %p192 = pneg %p37
        $region34: #{denoising_diffusion_linear.1} parent=31 // pred_check_branch
          %194 = sbr.rel (%p192) target = $region36
        $region35: #{denoising_diffusion_linear.1} parent=31 // pred_region
          %195 = dma.done [#allocation3], 256
        $region36: #{denoising_diffusion_linear.1} parent=31 // pred_fallthru
          _
        %s196 = sand.u32 %s21, 1
        %s197 = scalar_lea.sflag [#allocation6], %s196
        %s198 = sand.u32 %s50, 1
        %s199 = smul.addr %s198, 1024
        %s200 = scalar_lea.vmem [#allocation5], %s199
        // Predicated region
        $region37: #{denoising_diffusion_linear.1} parent=31 // pred_check
          %p201 = pneg %p63
        $region38: #{denoising_diffusion_linear.1} parent=31 // pred_check_branch
          %203 = sbr.rel (%p201) target = $region40
        $region39: #{denoising_diffusion_linear.1} parent=31 // pred_region
          %204 = dma.done %s197, 16384
        $region40: #{denoising_diffusion_linear.1} parent=31 // pred_fallthru
          _
        %s205 = sand.u32 %s21, 1
        %s206 = scalar_lea.sflag [#allocation6], %s205
        %s207 = sand.u32 %s76, 1
        %s208 = smul.addr %s207, 8
        %s209 = scalar_lea.vmem [#allocation7], %s208
        // Predicated region
        $region41: #{denoising_diffusion_linear.1} parent=31 // pred_check
          %p210 = pneg %p89
        $region42: #{denoising_diffusion_linear.1} parent=31 // pred_check_branch
          %212 = sbr.rel (%p210) target = $region44
        $region43: #{denoising_diffusion_linear.1} parent=31 // pred_region
          %213 = dma.done %s206, 128
        $region44: #{denoising_diffusion_linear.1} parent=31 // pred_fallthru
          _
        %p214 = pneg %p37
        %p215 = pneg %p34
        %s216 = sand.u32 %s21, 1
        %s217 = scalar_lea.sflag [#allocation6], %s216
        %s218 = sand.u32 %s50, 1
        %s219 = smul.addr %s218, 1024
        %s220 = scalar_lea.vmem [#allocation5], %s219
        %p221 = pneg %p63
        %p222 = pneg %p60
        %s223 = sand.u32 %s21, 1
        %s224 = scalar_lea.sflag [#allocation6], %s223
        %s225 = sand.u32 %s76, 1
        %s226 = smul.addr %s225, 8
        %s227 = scalar_lea.vmem [#allocation7], %s226
        %p228 = pneg %p89
        %p229 = pneg %p86
        %p230 = pneg %p115
        %p231 = pneg %p112
        %s232 = sand.u32 %s102, 1
        %s233 = scalar_lea.sflag [#allocation4], %s232
        %s234 = sand.u32 %s102, 1
        %s235 = smul.addr %s234, 8
        %s236 = scalar_lea.vmem [#allocation8], %s235
        %s237 = smul.u32 4, %s21
        %s238 = smul.u32 4, %s21
        %s239 = smul.u32 4, %s21
        %v240 = vld [vmem:[#allocation2] sm:$0xff]
        %v241 = vld [vmem:[#allocation2 + $0x8] sm:$0xff]
        %v244 = vcombine.high %v240, %v240
        %v246 = vunpack.c.l.s4 1983009808
        %v247 = vunpack.c.0.s8 %v246
        %v248 = vlaneseq
        %v249 = vshrl.u32 %v248, 7
        %v250 = vsub.s32 %v247, %v249
        %v251 = vrot.slane %v240, %v250
        %v253 = vunpack.c.l.s4 1983009808
        %v254 = vunpack.c.0.s8 %v253
        %v255 = vlaneseq
        %v256 = vshrl.u32 %v255, 7
        %v257 = vsub.s32 %v254, %v256
        %v258 = vrot.slane %v244, %v257
        %v259 = vcombine.high %v251, %v251
        %v260 = vcombine.high %v258, %v258
        %v261 = vcombine.high %v241, %v241
        %v263 = vunpack.c.l.s4 1983009808
        %v264 = vunpack.c.0.s8 %v263
        %v265 = vlaneseq
        %v266 = vshrl.u32 %v265, 7
        %v267 = vsub.s32 %v264, %v266
        %v268 = vrot.slane %v241, %v267
        %v270 = vunpack.c.l.s4 1983009808
        %v271 = vunpack.c.0.s8 %v270
        %v272 = vlaneseq
        %v273 = vshrl.u32 %v272, 7
        %v274 = vsub.s32 %v271, %v273
        %v275 = vrot.slane %v261, %v274
        %v276 = vcombine.high %v268, %v268
        %v277 = vcombine.high %v275, %v275
        %v286 = vpack.c.bf16 %v251, %v251
        %v287 = vpack.c.bf16 %v259, %v259
        %v288 = vpack.c.bf16 %v258, %v258
        %v289 = vpack.c.bf16 %v260, %v260
        %v290 = vpack.c.bf16 %v268, %v268
        %v291 = vpack.c.bf16 %v276, %v276
        %v292 = vpack.c.bf16 %v275, %v275
        %v293 = vpack.c.bf16 %v277, %v277
        %v294 = vld [vmem:[%s200] sm:$0xff]
        %v295 = vld [vmem:[%s200 + $0x8] sm:$0xff]
        %v296 = vld [vmem:[%s200 + $0x10] sm:$0xff]
        %v297 = vld [vmem:[%s200 + $0x18] sm:$0xff]
        %v298 = vld [vmem:[%s200 + $0x20] sm:$0xff]
        %v299 = vld [vmem:[%s200 + $0x28] sm:$0xff]
        %v300 = vld [vmem:[%s200 + $0x30] sm:$0xff]
        %v301 = vld [vmem:[%s200 + $0x38] sm:$0xff]
        %v302 = vld [vmem:[%s200 + $0x40] sm:$0xff]
        %v303 = vld [vmem:[%s200 + $0x48] sm:$0xff]
        %v304 = vld [vmem:[%s200 + $0x50] sm:$0xff]
        %v305 = vld [vmem:[%s200 + $0x58] sm:$0xff]
        %v306 = vld [vmem:[%s200 + $0x60] sm:$0xff]
        %v307 = vld [vmem:[%s200 + $0x68] sm:$0xff]
        %v308 = vld [vmem:[%s200 + $0x70] sm:$0xff]
        %v309 = vld [vmem:[%s200 + $0x78] sm:$0xff]
        %v310 = vld [vmem:[%s200 + $0x80] sm:$0xff]
        %v311 = vld [vmem:[%s200 + $0x88] sm:$0xff]
        %v312 = vld [vmem:[%s200 + $0x90] sm:$0xff]
        %v313 = vld [vmem:[%s200 + $0x98] sm:$0xff]
        %v314 = vld [vmem:[%s200 + $0xa0] sm:$0xff]
        %v315 = vld [vmem:[%s200 + $0xa8] sm:$0xff]
        %v316 = vld [vmem:[%s200 + $0xb0] sm:$0xff]
        %v317 = vld [vmem:[%s200 + $0xb8] sm:$0xff]
        %v318 = vld [vmem:[%s200 + $0xc0] sm:$0xff]
        %v319 = vld [vmem:[%s200 + $0xc8] sm:$0xff]
        %v320 = vld [vmem:[%s200 + $0xd0] sm:$0xff]
        %v321 = vld [vmem:[%s200 + $0xd8] sm:$0xff]
        %v322 = vld [vmem:[%s200 + $0xe0] sm:$0xff]
        %v323 = vld [vmem:[%s200 + $0xe8] sm:$0xff]
        %v324 = vld [vmem:[%s200 + $0xf0] sm:$0xff]
        %v325 = vld [vmem:[%s200 + $0xf8] sm:$0xff]
        %v326 = vld [vmem:[%s200 + $0x100] sm:$0xff]
        %v327 = vld [vmem:[%s200 + $0x108] sm:$0xff]
        %v328 = vld [vmem:[%s200 + $0x110] sm:$0xff]
        %v329 = vld [vmem:[%s200 + $0x118] sm:$0xff]
        %v330 = vld [vmem:[%s200 + $0x120] sm:$0xff]
        %v331 = vld [vmem:[%s200 + $0x128] sm:$0xff]
        %v332 = vld [vmem:[%s200 + $0x130] sm:$0xff]
        %v333 = vld [vmem:[%s200 + $0x138] sm:$0xff]
        %v334 = vld [vmem:[%s200 + $0x140] sm:$0xff]
        %v335 = vld [vmem:[%s200 + $0x148] sm:$0xff]
        %v336 = vld [vmem:[%s200 + $0x150] sm:$0xff]
        %v337 = vld [vmem:[%s200 + $0x158] sm:$0xff]
        %v338 = vld [vmem:[%s200 + $0x160] sm:$0xff]
        %v339 = vld [vmem:[%s200 + $0x168] sm:$0xff]
        %v340 = vld [vmem:[%s200 + $0x170] sm:$0xff]
        %v341 = vld [vmem:[%s200 + $0x178] sm:$0xff]
        %v342 = vld [vmem:[%s200 + $0x180] sm:$0xff]
        %v343 = vld [vmem:[%s200 + $0x188] sm:$0xff]
        %v344 = vld [vmem:[%s200 + $0x190] sm:$0xff]
        %v345 = vld [vmem:[%s200 + $0x198] sm:$0xff]
        %v346 = vld [vmem:[%s200 + $0x1a0] sm:$0xff]
        %v347 = vld [vmem:[%s200 + $0x1a8] sm:$0xff]
        %v348 = vld [vmem:[%s200 + $0x1b0] sm:$0xff]
        %v349 = vld [vmem:[%s200 + $0x1b8] sm:$0xff]
        %v350 = vld [vmem:[%s200 + $0x1c0] sm:$0xff]
        %v351 = vld [vmem:[%s200 + $0x1c8] sm:$0xff]
        %v352 = vld [vmem:[%s200 + $0x1d0] sm:$0xff]
        %v353 = vld [vmem:[%s200 + $0x1d8] sm:$0xff]
        %v354 = vld [vmem:[%s200 + $0x1e0] sm:$0xff]
        %v355 = vld [vmem:[%s200 + $0x1e8] sm:$0xff]
        %v356 = vld [vmem:[%s200 + $0x1f0] sm:$0xff]
        %v357 = vld [vmem:[%s200 + $0x1f8] sm:$0xff]
        %v358 = vld [vmem:[%s200 + $0x200] sm:$0xff]
        %v359 = vld [vmem:[%s200 + $0x208] sm:$0xff]
        %v360 = vld [vmem:[%s200 + $0x210] sm:$0xff]
        %v361 = vld [vmem:[%s200 + $0x218] sm:$0xff]
        %v362 = vld [vmem:[%s200 + $0x220] sm:$0xff]
        %v363 = vld [vmem:[%s200 + $0x228] sm:$0xff]
        %v364 = vld [vmem:[%s200 + $0x230] sm:$0xff]
        %v365 = vld [vmem:[%s200 + $0x238] sm:$0xff]
        %v366 = vld [vmem:[%s200 + $0x240] sm:$0xff]
        %v367 = vld [vmem:[%s200 + $0x248] sm:$0xff]
        %v368 = vld [vmem:[%s200 + $0x250] sm:$0xff]
        %v369 = vld [vmem:[%s200 + $0x258] sm:$0xff]
        %v370 = vld [vmem:[%s200 + $0x260] sm:$0xff]
        %v371 = vld [vmem:[%s200 + $0x268] sm:$0xff]
        %v372 = vld [vmem:[%s200 + $0x270] sm:$0xff]
        %v373 = vld [vmem:[%s200 + $0x278] sm:$0xff]
        %v374 = vld [vmem:[%s200 + $0x280] sm:$0xff]
        %v375 = vld [vmem:[%s200 + $0x288] sm:$0xff]
        %v376 = vld [vmem:[%s200 + $0x290] sm:$0xff]
        %v377 = vld [vmem:[%s200 + $0x298] sm:$0xff]
        %v378 = vld [vmem:[%s200 + $0x2a0] sm:$0xff]
        %v379 = vld [vmem:[%s200 + $0x2a8] sm:$0xff]
        %v380 = vld [vmem:[%s200 + $0x2b0] sm:$0xff]
        %v381 = vld [vmem:[%s200 + $0x2b8] sm:$0xff]
        %v382 = vld [vmem:[%s200 + $0x2c0] sm:$0xff]
        %v383 = vld [vmem:[%s200 + $0x2c8] sm:$0xff]
        %v384 = vld [vmem:[%s200 + $0x2d0] sm:$0xff]
        %v385 = vld [vmem:[%s200 + $0x2d8] sm:$0xff]
        %v386 = vld [vmem:[%s200 + $0x2e0] sm:$0xff]
        %v387 = vld [vmem:[%s200 + $0x2e8] sm:$0xff]
        %v388 = vld [vmem:[%s200 + $0x2f0] sm:$0xff]
        %v389 = vld [vmem:[%s200 + $0x2f8] sm:$0xff]
        %v390 = vld [vmem:[%s200 + $0x300] sm:$0xff]
        %v391 = vld [vmem:[%s200 + $0x308] sm:$0xff]
        %v392 = vld [vmem:[%s200 + $0x310] sm:$0xff]
        %v393 = vld [vmem:[%s200 + $0x318] sm:$0xff]
        %v394 = vld [vmem:[%s200 + $0x320] sm:$0xff]
        %v395 = vld [vmem:[%s200 + $0x328] sm:$0xff]
        %v396 = vld [vmem:[%s200 + $0x330] sm:$0xff]
        %v397 = vld [vmem:[%s200 + $0x338] sm:$0xff]
        %v398 = vld [vmem:[%s200 + $0x340] sm:$0xff]
        %v399 = vld [vmem:[%s200 + $0x348] sm:$0xff]
        %v400 = vld [vmem:[%s200 + $0x350] sm:$0xff]
        %v401 = vld [vmem:[%s200 + $0x358] sm:$0xff]
        %v402 = vld [vmem:[%s200 + $0x360] sm:$0xff]
        %v403 = vld [vmem:[%s200 + $0x368] sm:$0xff]
        %v404 = vld [vmem:[%s200 + $0x370] sm:$0xff]
        %v405 = vld [vmem:[%s200 + $0x378] sm:$0xff]
        %v406 = vld [vmem:[%s200 + $0x380] sm:$0xff]
        %v407 = vld [vmem:[%s200 + $0x388] sm:$0xff]
        %v408 = vld [vmem:[%s200 + $0x390] sm:$0xff]
        %v409 = vld [vmem:[%s200 + $0x398] sm:$0xff]
        %v410 = vld [vmem:[%s200 + $0x3a0] sm:$0xff]
        %v411 = vld [vmem:[%s200 + $0x3a8] sm:$0xff]
        %v412 = vld [vmem:[%s200 + $0x3b0] sm:$0xff]
        %v413 = vld [vmem:[%s200 + $0x3b8] sm:$0xff]
        %v414 = vld [vmem:[%s200 + $0x3c0] sm:$0xff]
        %v415 = vld [vmem:[%s200 + $0x3c8] sm:$0xff]
        %v416 = vld [vmem:[%s200 + $0x3d0] sm:$0xff]
        %v417 = vld [vmem:[%s200 + $0x3d8] sm:$0xff]
        %v418 = vld [vmem:[%s200 + $0x3e0] sm:$0xff]
        %v419 = vld [vmem:[%s200 + $0x3e8] sm:$0xff]
        %v420 = vld [vmem:[%s200 + $0x3f0] sm:$0xff]
        %v421 = vld [vmem:[%s200 + $0x3f8] sm:$0xff]
        %v422 = vunpack.c.l.s8.bf16 %v294
        %v423 = vunpack.c.l.s8.bf16 %v295
        %v424 = vunpack.c.l.s8.bf16 %v296
        %v425 = vunpack.c.l.s8.bf16 %v297
        %v426 = vunpack.c.h.s8.bf16 %v294
        %v427 = vunpack.c.h.s8.bf16 %v295
        %v428 = vunpack.c.h.s8.bf16 %v296
        %v429 = vunpack.c.h.s8.bf16 %v297
        %v430 = vunpack.c.l.s8.bf16 %v298
        %v431 = vunpack.c.l.s8.bf16 %v299
        %v432 = vunpack.c.l.s8.bf16 %v300
        %v433 = vunpack.c.l.s8.bf16 %v301
        %v434 = vunpack.c.h.s8.bf16 %v298
        %v435 = vunpack.c.h.s8.bf16 %v299
        %v436 = vunpack.c.h.s8.bf16 %v300
        %v437 = vunpack.c.h.s8.bf16 %v301
        %v438 = vunpack.c.l.s8.bf16 %v302
        %v439 = vunpack.c.l.s8.bf16 %v303
        %v440 = vunpack.c.l.s8.bf16 %v304
        %v441 = vunpack.c.l.s8.bf16 %v305
        %v442 = vunpack.c.h.s8.bf16 %v302
        %v443 = vunpack.c.h.s8.bf16 %v303
        %v444 = vunpack.c.h.s8.bf16 %v304
        %v445 = vunpack.c.h.s8.bf16 %v305
        %v446 = vunpack.c.l.s8.bf16 %v306
        %v447 = vunpack.c.l.s8.bf16 %v307
        %v448 = vunpack.c.l.s8.bf16 %v308
        %v449 = vunpack.c.l.s8.bf16 %v309
        %v450 = vunpack.c.h.s8.bf16 %v306
        %v451 = vunpack.c.h.s8.bf16 %v307
        %v452 = vunpack.c.h.s8.bf16 %v308
        %v453 = vunpack.c.h.s8.bf16 %v309
        %v454 = vunpack.c.l.s8.bf16 %v310
        %v455 = vunpack.c.l.s8.bf16 %v311
        %v456 = vunpack.c.l.s8.bf16 %v312
        %v457 = vunpack.c.l.s8.bf16 %v313
        %v458 = vunpack.c.h.s8.bf16 %v310
        %v459 = vunpack.c.h.s8.bf16 %v311
        %v460 = vunpack.c.h.s8.bf16 %v312
        %v461 = vunpack.c.h.s8.bf16 %v313
        %v462 = vunpack.c.l.s8.bf16 %v314
        %v463 = vunpack.c.l.s8.bf16 %v315
        %v464 = vunpack.c.l.s8.bf16 %v316
        %v465 = vunpack.c.l.s8.bf16 %v317
        %v466 = vunpack.c.h.s8.bf16 %v314
        %v467 = vunpack.c.h.s8.bf16 %v315
        %v468 = vunpack.c.h.s8.bf16 %v316
        %v469 = vunpack.c.h.s8.bf16 %v317
        %v470 = vunpack.c.l.s8.bf16 %v318
        %v471 = vunpack.c.l.s8.bf16 %v319
        %v472 = vunpack.c.l.s8.bf16 %v320
        %v473 = vunpack.c.l.s8.bf16 %v321
        %v474 = vunpack.c.h.s8.bf16 %v318
        %v475 = vunpack.c.h.s8.bf16 %v319
        %v476 = vunpack.c.h.s8.bf16 %v320
        %v477 = vunpack.c.h.s8.bf16 %v321
        %v478 = vunpack.c.l.s8.bf16 %v322
        %v479 = vunpack.c.l.s8.bf16 %v323
        %v480 = vunpack.c.l.s8.bf16 %v324
        %v481 = vunpack.c.l.s8.bf16 %v325
        %v482 = vunpack.c.h.s8.bf16 %v322
        %v483 = vunpack.c.h.s8.bf16 %v323
        %v484 = vunpack.c.h.s8.bf16 %v324
        %v485 = vunpack.c.h.s8.bf16 %v325
        %v486 = vunpack.c.l.s8.bf16 %v326
        %v487 = vunpack.c.l.s8.bf16 %v327
        %v488 = vunpack.c.l.s8.bf16 %v328
        %v489 = vunpack.c.l.s8.bf16 %v329
        %v490 = vunpack.c.h.s8.bf16 %v326
        %v491 = vunpack.c.h.s8.bf16 %v327
        %v492 = vunpack.c.h.s8.bf16 %v328
        %v493 = vunpack.c.h.s8.bf16 %v329
        %v494 = vunpack.c.l.s8.bf16 %v330
        %v495 = vunpack.c.l.s8.bf16 %v331
        %v496 = vunpack.c.l.s8.bf16 %v332
        %v497 = vunpack.c.l.s8.bf16 %v333
        %v498 = vunpack.c.h.s8.bf16 %v330
        %v499 = vunpack.c.h.s8.bf16 %v331
        %v500 = vunpack.c.h.s8.bf16 %v332
        %v501 = vunpack.c.h.s8.bf16 %v333
        %v502 = vunpack.c.l.s8.bf16 %v334
        %v503 = vunpack.c.l.s8.bf16 %v335
        %v504 = vunpack.c.l.s8.bf16 %v336
        %v505 = vunpack.c.l.s8.bf16 %v337
        %v506 = vunpack.c.h.s8.bf16 %v334
        %v507 = vunpack.c.h.s8.bf16 %v335
        %v508 = vunpack.c.h.s8.bf16 %v336
        %v509 = vunpack.c.h.s8.bf16 %v337
        %v510 = vunpack.c.l.s8.bf16 %v338
        %v511 = vunpack.c.l.s8.bf16 %v339
        %v512 = vunpack.c.l.s8.bf16 %v340
        %v513 = vunpack.c.l.s8.bf16 %v341
        %v514 = vunpack.c.h.s8.bf16 %v338
        %v515 = vunpack.c.h.s8.bf16 %v339
        %v516 = vunpack.c.h.s8.bf16 %v340
        %v517 = vunpack.c.h.s8.bf16 %v341
        %v518 = vunpack.c.l.s8.bf16 %v342
        %v519 = vunpack.c.l.s8.bf16 %v343
        %v520 = vunpack.c.l.s8.bf16 %v344
        %v521 = vunpack.c.l.s8.bf16 %v345
        %v522 = vunpack.c.h.s8.bf16 %v342
        %v523 = vunpack.c.h.s8.bf16 %v343
        %v524 = vunpack.c.h.s8.bf16 %v344
        %v525 = vunpack.c.h.s8.bf16 %v345
        %v526 = vunpack.c.l.s8.bf16 %v346
        %v527 = vunpack.c.l.s8.bf16 %v347
        %v528 = vunpack.c.l.s8.bf16 %v348
        %v529 = vunpack.c.l.s8.bf16 %v349
        %v530 = vunpack.c.h.s8.bf16 %v346
        %v531 = vunpack.c.h.s8.bf16 %v347
        %v532 = vunpack.c.h.s8.bf16 %v348
        %v533 = vunpack.c.h.s8.bf16 %v349
        %v534 = vunpack.c.l.s8.bf16 %v350
        %v535 = vunpack.c.l.s8.bf16 %v351
        %v536 = vunpack.c.l.s8.bf16 %v352
        %v537 = vunpack.c.l.s8.bf16 %v353
        %v538 = vunpack.c.h.s8.bf16 %v350
        %v539 = vunpack.c.h.s8.bf16 %v351
        %v540 = vunpack.c.h.s8.bf16 %v352
        %v541 = vunpack.c.h.s8.bf16 %v353
        %v542 = vunpack.c.l.s8.bf16 %v354
        %v543 = vunpack.c.l.s8.bf16 %v355
        %v544 = vunpack.c.l.s8.bf16 %v356
        %v545 = vunpack.c.l.s8.bf16 %v357
        %v546 = vunpack.c.h.s8.bf16 %v354
        %v547 = vunpack.c.h.s8.bf16 %v355
        %v548 = vunpack.c.h.s8.bf16 %v356
        %v549 = vunpack.c.h.s8.bf16 %v357
        %v550 = vunpack.c.l.s8.bf16 %v358
        %v551 = vunpack.c.l.s8.bf16 %v359
        %v552 = vunpack.c.l.s8.bf16 %v360
        %v553 = vunpack.c.l.s8.bf16 %v361
        %v554 = vunpack.c.h.s8.bf16 %v358
        %v555 = vunpack.c.h.s8.bf16 %v359
        %v556 = vunpack.c.h.s8.bf16 %v360
        %v557 = vunpack.c.h.s8.bf16 %v361
        %v558 = vunpack.c.l.s8.bf16 %v362
        %v559 = vunpack.c.l.s8.bf16 %v363
        %v560 = vunpack.c.l.s8.bf16 %v364
        %v561 = vunpack.c.l.s8.bf16 %v365
        %v562 = vunpack.c.h.s8.bf16 %v362
        %v563 = vunpack.c.h.s8.bf16 %v363
        %v564 = vunpack.c.h.s8.bf16 %v364
        %v565 = vunpack.c.h.s8.bf16 %v365
        %v566 = vunpack.c.l.s8.bf16 %v366
        %v567 = vunpack.c.l.s8.bf16 %v367
        %v568 = vunpack.c.l.s8.bf16 %v368
        %v569 = vunpack.c.l.s8.bf16 %v369
        %v570 = vunpack.c.h.s8.bf16 %v366
        %v571 = vunpack.c.h.s8.bf16 %v367
        %v572 = vunpack.c.h.s8.bf16 %v368
        %v573 = vunpack.c.h.s8.bf16 %v369
        %v574 = vunpack.c.l.s8.bf16 %v370
        %v575 = vunpack.c.l.s8.bf16 %v371
        %v576 = vunpack.c.l.s8.bf16 %v372
        %v577 = vunpack.c.l.s8.bf16 %v373
        %v578 = vunpack.c.h.s8.bf16 %v370
        %v579 = vunpack.c.h.s8.bf16 %v371
        %v580 = vunpack.c.h.s8.bf16 %v372
        %v581 = vunpack.c.h.s8.bf16 %v373
        %v582 = vunpack.c.l.s8.bf16 %v374
        %v583 = vunpack.c.l.s8.bf16 %v375
        %v584 = vunpack.c.l.s8.bf16 %v376
        %v585 = vunpack.c.l.s8.bf16 %v377
        %v586 = vunpack.c.h.s8.bf16 %v374
        %v587 = vunpack.c.h.s8.bf16 %v375
        %v588 = vunpack.c.h.s8.bf16 %v376
        %v589 = vunpack.c.h.s8.bf16 %v377
        %v590 = vunpack.c.l.s8.bf16 %v378
        %v591 = vunpack.c.l.s8.bf16 %v379
        %v592 = vunpack.c.l.s8.bf16 %v380
        %v593 = vunpack.c.l.s8.bf16 %v381
        %v594 = vunpack.c.h.s8.bf16 %v378
        %v595 = vunpack.c.h.s8.bf16 %v379
        %v596 = vunpack.c.h.s8.bf16 %v380
        %v597 = vunpack.c.h.s8.bf16 %v381
        %v598 = vunpack.c.l.s8.bf16 %v382
        %v599 = vunpack.c.l.s8.bf16 %v383
        %v600 = vunpack.c.l.s8.bf16 %v384
        %v601 = vunpack.c.l.s8.bf16 %v385
        %v602 = vunpack.c.h.s8.bf16 %v382
        %v603 = vunpack.c.h.s8.bf16 %v383
        %v604 = vunpack.c.h.s8.bf16 %v384
        %v605 = vunpack.c.h.s8.bf16 %v385
        %v606 = vunpack.c.l.s8.bf16 %v386
        %v607 = vunpack.c.l.s8.bf16 %v387
        %v608 = vunpack.c.l.s8.bf16 %v388
        %v609 = vunpack.c.l.s8.bf16 %v389
        %v610 = vunpack.c.h.s8.bf16 %v386
        %v611 = vunpack.c.h.s8.bf16 %v387
        %v612 = vunpack.c.h.s8.bf16 %v388
        %v613 = vunpack.c.h.s8.bf16 %v389
        %v614 = vunpack.c.l.s8.bf16 %v390
        %v615 = vunpack.c.l.s8.bf16 %v391
        %v616 = vunpack.c.l.s8.bf16 %v392
        %v617 = vunpack.c.l.s8.bf16 %v393
        %v618 = vunpack.c.h.s8.bf16 %v390
        %v619 = vunpack.c.h.s8.bf16 %v391
        %v620 = vunpack.c.h.s8.bf16 %v392
        %v621 = vunpack.c.h.s8.bf16 %v393
        %v622 = vunpack.c.l.s8.bf16 %v394
        %v623 = vunpack.c.l.s8.bf16 %v395
        %v624 = vunpack.c.l.s8.bf16 %v396
        %v625 = vunpack.c.l.s8.bf16 %v397
        %v626 = vunpack.c.h.s8.bf16 %v394
        %v627 = vunpack.c.h.s8.bf16 %v395
        %v628 = vunpack.c.h.s8.bf16 %v396
        %v629 = vunpack.c.h.s8.bf16 %v397
        %v630 = vunpack.c.l.s8.bf16 %v398
        %v631 = vunpack.c.l.s8.bf16 %v399
        %v632 = vunpack.c.l.s8.bf16 %v400
        %v633 = vunpack.c.l.s8.bf16 %v401
        %v634 = vunpack.c.h.s8.bf16 %v398
        %v635 = vunpack.c.h.s8.bf16 %v399
        %v636 = vunpack.c.h.s8.bf16 %v400
        %v637 = vunpack.c.h.s8.bf16 %v401
        %v638 = vunpack.c.l.s8.bf16 %v402
        %v639 = vunpack.c.l.s8.bf16 %v403
        %v640 = vunpack.c.l.s8.bf16 %v404
        %v641 = vunpack.c.l.s8.bf16 %v405
        %v642 = vunpack.c.h.s8.bf16 %v402
        %v643 = vunpack.c.h.s8.bf16 %v403
        %v644 = vunpack.c.h.s8.bf16 %v404
        %v645 = vunpack.c.h.s8.bf16 %v405
        %v646 = vunpack.c.l.s8.bf16 %v406
        %v647 = vunpack.c.l.s8.bf16 %v407
        %v648 = vunpack.c.l.s8.bf16 %v408
        %v649 = vunpack.c.l.s8.bf16 %v409
        %v650 = vunpack.c.h.s8.bf16 %v406
        %v651 = vunpack.c.h.s8.bf16 %v407
        %v652 = vunpack.c.h.s8.bf16 %v408
        %v653 = vunpack.c.h.s8.bf16 %v409
        %v654 = vunpack.c.l.s8.bf16 %v410
        %v655 = vunpack.c.l.s8.bf16 %v411
        %v656 = vunpack.c.l.s8.bf16 %v412
        %v657 = vunpack.c.l.s8.bf16 %v413
        %v658 = vunpack.c.h.s8.bf16 %v410
        %v659 = vunpack.c.h.s8.bf16 %v411
        %v660 = vunpack.c.h.s8.bf16 %v412
        %v661 = vunpack.c.h.s8.bf16 %v413
        %v662 = vunpack.c.l.s8.bf16 %v414
        %v663 = vunpack.c.l.s8.bf16 %v415
        %v664 = vunpack.c.l.s8.bf16 %v416
        %v665 = vunpack.c.l.s8.bf16 %v417
        %v666 = vunpack.c.h.s8.bf16 %v414
        %v667 = vunpack.c.h.s8.bf16 %v415
        %v668 = vunpack.c.h.s8.bf16 %v416
        %v669 = vunpack.c.h.s8.bf16 %v417
        %v670 = vunpack.c.l.s8.bf16 %v418
        %v671 = vunpack.c.l.s8.bf16 %v419
        %v672 = vunpack.c.l.s8.bf16 %v420
        %v673 = vunpack.c.l.s8.bf16 %v421
        %v674 = vunpack.c.h.s8.bf16 %v418
        %v675 = vunpack.c.h.s8.bf16 %v419
        %v676 = vunpack.c.h.s8.bf16 %v420
        %v677 = vunpack.c.h.s8.bf16 %v421
        %678 = vmatprep.subr.bf16.mxu0 %v423
        %679 = vmatpush1.bf16.msra.mxu0 %v422
        %680 = vmatprep.subr.bf16.mxu0 %v427
        %681 = vmatpush1.bf16.msra.mxu0 %v426
        %682 = vmatprep.subr.bf16.mxu0 %v431
        %683 = vmatpush1.bf16.msra.mxu0 %v430
        %684 = vmatprep.subr.bf16.mxu0 %v435
        %685 = vmatpush1.bf16.msra.mxu0 %v434
        %686 = vmatprep.subr.bf16.mxu0 %v439
        %687 = vmatpush1.bf16.msra.mxu0 %v438
        %688 = vmatprep.subr.bf16.mxu0 %v443
        %689 = vmatpush1.bf16.msra.mxu0 %v442
        %690 = vmatprep.subr.bf16.mxu0 %v447
        %691 = vmatpush1.bf16.msra.mxu0 %v446
        %692 = vmatprep.subr.bf16.mxu0 %v451
        %693 = vmatpush1.bf16.msra.mxu0 %v450
        %694 = vmatprep.subr.bf16.mxu0 %v455
        %695 = vmatpush1.bf16.msra.mxu0 %v454
        %696 = vmatprep.subr.bf16.mxu0 %v459
        %697 = vmatpush1.bf16.msra.mxu0 %v458
        %698 = vmatprep.subr.bf16.mxu0 %v463
        %699 = vmatpush1.bf16.msra.mxu0 %v462
        %700 = vmatprep.subr.bf16.mxu0 %v467
        %701 = vmatpush1.bf16.msra.mxu0 %v466
        %702 = vmatprep.subr.bf16.mxu0 %v471
        %703 = vmatpush1.bf16.msra.mxu0 %v470
        %704 = vmatprep.subr.bf16.mxu0 %v475
        %705 = vmatpush1.bf16.msra.mxu0 %v474
        %706 = vmatprep.subr.bf16.mxu0 %v479
        %707 = vmatpush1.bf16.msra.mxu0 %v478
        %708 = vmatprep.subr.bf16.mxu0 %v483
        %709 = vmatpush1.bf16.msra.mxu0 %v482
        %710 = vmatprep.mubr.bf16.mxu0 %v287
        %711 = vmatmul.mubr.bf16.gmra.mrb[0].mxu0 %v286
        %v712 = vpop.f32.mrb[0].mxu0
        %v713 = vadd.f32 0.0, %v712
        %v714 = vpop.f32.mrb[0].mxu0
        %v715 = vadd.f32 0.0, %v714
        %v716 = vpop.f32.mrb[0].mxu0
        %v717 = vpop.f32.mrb[0].mxu0
        %718 = vdwg.mxu0
        %719 = vmatprep.subr.bf16.mxu0 %v487
        %720 = vmatpush1.bf16.msra.mxu0 %v486
        %721 = vmatprep.subr.bf16.mxu0 %v491
        %722 = vmatpush1.bf16.msra.mxu0 %v490
        %723 = vmatprep.subr.bf16.mxu0 %v495
        %724 = vmatpush1.bf16.msra.mxu0 %v494
        %725 = vmatprep.subr.bf16.mxu0 %v499
        %726 = vmatpush1.bf16.msra.mxu0 %v498
        %727 = vmatprep.subr.bf16.mxu0 %v503
        %728 = vmatpush1.bf16.msra.mxu0 %v502
        %729 = vmatprep.subr.bf16.mxu0 %v507
        %730 = vmatpush1.bf16.msra.mxu0 %v506
        %731 = vmatprep.subr.bf16.mxu0 %v511
        %732 = vmatpush1.bf16.msra.mxu0 %v510
        %733 = vmatprep.subr.bf16.mxu0 %v515
        %734 = vmatpush1.bf16.msra.mxu0 %v514
        %735 = vmatprep.subr.bf16.mxu0 %v519
        %736 = vmatpush1.bf16.msra.mxu0 %v518
        %737 = vmatprep.subr.bf16.mxu0 %v523
        %738 = vmatpush1.bf16.msra.mxu0 %v522
        %739 = vmatprep.subr.bf16.mxu0 %v527
        %740 = vmatpush1.bf16.msra.mxu0 %v526
        %741 = vmatprep.subr.bf16.mxu0 %v531
        %742 = vmatpush1.bf16.msra.mxu0 %v530
        %743 = vmatprep.subr.bf16.mxu0 %v535
        %744 = vmatpush1.bf16.msra.mxu0 %v534
        %745 = vmatprep.subr.bf16.mxu0 %v539
        %746 = vmatpush1.bf16.msra.mxu0 %v538
        %747 = vmatprep.subr.bf16.mxu0 %v543
        %748 = vmatpush1.bf16.msra.mxu0 %v542
        %749 = vmatprep.subr.bf16.mxu0 %v547
        %750 = vmatpush1.bf16.msra.mxu0 %v546
        %751 = vmatprep.mubr.bf16.mxu0 %v289
        %752 = vmatmul.mubr.bf16.gmra.mrb[0].mxu0 %v288
        %v753 = vpop.f32.mrb[0].mxu0
        %v754 = vadd.f32 %v713, %v753
        %v755 = vpop.f32.mrb[0].mxu0
        %v756 = vadd.f32 %v715, %v755
        %v757 = vpop.f32.mrb[0].mxu0
        %v758 = vpop.f32.mrb[0].mxu0
        %759 = vdwg.mxu0
        %760 = vmatprep.subr.bf16.mxu0 %v551
        %761 = vmatpush1.bf16.msra.mxu0 %v550
        %762 = vmatprep.subr.bf16.mxu0 %v555
        %763 = vmatpush1.bf16.msra.mxu0 %v554
        %764 = vmatprep.subr.bf16.mxu0 %v559
        %765 = vmatpush1.bf16.msra.mxu0 %v558
        %766 = vmatprep.subr.bf16.mxu0 %v563
        %767 = vmatpush1.bf16.msra.mxu0 %v562
        %768 = vmatprep.subr.bf16.mxu0 %v567
        %769 = vmatpush1.bf16.msra.mxu0 %v566
        %770 = vmatprep.subr.bf16.mxu0 %v571
        %771 = vmatpush1.bf16.msra.mxu0 %v570
        %772 = vmatprep.subr.bf16.mxu0 %v575
        %773 = vmatpush1.bf16.msra.mxu0 %v574
        %774 = vmatprep.subr.bf16.mxu0 %v579
        %775 = vmatpush1.bf16.msra.mxu0 %v578
        %776 = vmatprep.subr.bf16.mxu0 %v583
        %777 = vmatpush1.bf16.msra.mxu0 %v582
        %778 = vmatprep.subr.bf16.mxu0 %v587
        %779 = vmatpush1.bf16.msra.mxu0 %v586
        %780 = vmatprep.subr.bf16.mxu0 %v591
        %781 = vmatpush1.bf16.msra.mxu0 %v590
        %782 = vmatprep.subr.bf16.mxu0 %v595
        %783 = vmatpush1.bf16.msra.mxu0 %v594
        %784 = vmatprep.subr.bf16.mxu0 %v599
        %785 = vmatpush1.bf16.msra.mxu0 %v598
        %786 = vmatprep.subr.bf16.mxu0 %v603
        %787 = vmatpush1.bf16.msra.mxu0 %v602
        %788 = vmatprep.subr.bf16.mxu0 %v607
        %789 = vmatpush1.bf16.msra.mxu0 %v606
        %790 = vmatprep.subr.bf16.mxu0 %v611
        %791 = vmatpush1.bf16.msra.mxu0 %v610
        %792 = vmatprep.mubr.bf16.mxu0 %v291
        %793 = vmatmul.mubr.bf16.gmra.mrb[0].mxu0 %v290
        %v794 = vpop.f32.mrb[0].mxu0
        %v795 = vadd.f32 %v754, %v794
        %v796 = vpop.f32.mrb[0].mxu0
        %v797 = vadd.f32 %v756, %v796
        %v798 = vpop.f32.mrb[0].mxu0
        %v799 = vpop.f32.mrb[0].mxu0
        %800 = vdwg.mxu0
        %801 = vmatprep.subr.bf16.mxu0 %v615
        %802 = vmatpush1.bf16.msra.mxu0 %v614
        %803 = vmatprep.subr.bf16.mxu0 %v619
        %804 = vmatpush1.bf16.msra.mxu0 %v618
        %805 = vmatprep.subr.bf16.mxu0 %v623
        %806 = vmatpush1.bf16.msra.mxu0 %v622
        %807 = vmatprep.subr.bf16.mxu0 %v627
        %808 = vmatpush1.bf16.msra.mxu0 %v626
        %809 = vmatprep.subr.bf16.mxu0 %v631
        %810 = vmatpush1.bf16.msra.mxu0 %v630
        %811 = vmatprep.subr.bf16.mxu0 %v635
        %812 = vmatpush1.bf16.msra.mxu0 %v634
        %813 = vmatprep.subr.bf16.mxu0 %v639
        %814 = vmatpush1.bf16.msra.mxu0 %v638
        %815 = vmatprep.subr.bf16.mxu0 %v643
        %816 = vmatpush1.bf16.msra.mxu0 %v642
        %817 = vmatprep.subr.bf16.mxu0 %v647
        %818 = vmatpush1.bf16.msra.mxu0 %v646
        %819 = vmatprep.subr.bf16.mxu0 %v651
        %820 = vmatpush1.bf16.msra.mxu0 %v650
        %821 = vmatprep.subr.bf16.mxu0 %v655
        %822 = vmatpush1.bf16.msra.mxu0 %v654
        %823 = vmatprep.subr.bf16.mxu0 %v659
        %824 = vmatpush1.bf16.msra.mxu0 %v658
        %825 = vmatprep.subr.bf16.mxu0 %v663
        %826 = vmatpush1.bf16.msra.mxu0 %v662
        %827 = vmatprep.subr.bf16.mxu0 %v667
        %828 = vmatpush1.bf16.msra.mxu0 %v666
        %829 = vmatprep.subr.bf16.mxu0 %v671
        %830 = vmatpush1.bf16.msra.mxu0 %v670
        %831 = vmatprep.subr.bf16.mxu0 %v675
        %832 = vmatpush1.bf16.msra.mxu0 %v674
        %833 = vmatprep.mubr.bf16.mxu0 %v293
        %834 = vmatmul.mubr.bf16.gmra.mrb[0].mxu0 %v292
        %v835 = vpop.f32.mrb[0].mxu0
        %v836 = vadd.f32 %v795, %v835
        %v837 = vpop.f32.mrb[0].mxu0
        %v838 = vadd.f32 %v797, %v837
        %v839 = vpop.f32.mrb[0].mxu0
        %v840 = vpop.f32.mrb[0].mxu0
        %841 = vdwg.mxu0
        %842 = vmatprep.subr.bf16.mxu0 %v425
        %843 = vmatpush1.bf16.msra.mxu0 %v424
        %844 = vmatprep.subr.bf16.mxu0 %v429
        %845 = vmatpush1.bf16.msra.mxu0 %v428
        %846 = vmatprep.subr.bf16.mxu0 %v433
        %847 = vmatpush1.bf16.msra.mxu0 %v432
        %848 = vmatprep.subr.bf16.mxu0 %v437
        %849 = vmatpush1.bf16.msra.mxu0 %v436
        %850 = vmatprep.subr.bf16.mxu0 %v441
        %851 = vmatpush1.bf16.msra.mxu0 %v440
        %852 = vmatprep.subr.bf16.mxu0 %v445
        %853 = vmatpush1.bf16.msra.mxu0 %v444
        %854 = vmatprep.subr.bf16.mxu0 %v449
        %855 = vmatpush1.bf16.msra.mxu0 %v448
        %856 = vmatprep.subr.bf16.mxu0 %v453
        %857 = vmatpush1.bf16.msra.mxu0 %v452
        %858 = vmatprep.subr.bf16.mxu0 %v457
        %859 = vmatpush1.bf16.msra.mxu0 %v456
        %860 = vmatprep.subr.bf16.mxu0 %v461
        %861 = vmatpush1.bf16.msra.mxu0 %v460
        %862 = vmatprep.subr.bf16.mxu0 %v465
        %863 = vmatpush1.bf16.msra.mxu0 %v464
        %864 = vmatprep.subr.bf16.mxu0 %v469
        %865 = vmatpush1.bf16.msra.mxu0 %v468
        %866 = vmatprep.subr.bf16.mxu0 %v473
        %867 = vmatpush1.bf16.msra.mxu0 %v472
        %868 = vmatprep.subr.bf16.mxu0 %v477
        %869 = vmatpush1.bf16.msra.mxu0 %v476
        %870 = vmatprep.subr.bf16.mxu0 %v481
        %871 = vmatpush1.bf16.msra.mxu0 %v480
        %872 = vmatprep.subr.bf16.mxu0 %v485
        %873 = vmatpush1.bf16.msra.mxu0 %v484
        %874 = vmatprep.mubr.bf16.mxu0 %v287
        %875 = vmatmul.mubr.bf16.gmra.mrb[0].mxu0 %v286
        %v876 = vpop.f32.mrb[0].mxu0
        %v877 = vadd.f32 0.0, %v876
        %v878 = vpop.f32.mrb[0].mxu0
        %v879 = vadd.f32 0.0, %v878
        %v880 = vpop.f32.mrb[0].mxu0
        %v881 = vpop.f32.mrb[0].mxu0
        %882 = vdwg.mxu0
        %883 = vmatprep.subr.bf16.mxu0 %v489
        %884 = vmatpush1.bf16.msra.mxu0 %v488
        %885 = vmatprep.subr.bf16.mxu0 %v493
        %886 = vmatpush1.bf16.msra.mxu0 %v492
        %887 = vmatprep.subr.bf16.mxu0 %v497
        %888 = vmatpush1.bf16.msra.mxu0 %v496
        %889 = vmatprep.subr.bf16.mxu0 %v501
        %890 = vmatpush1.bf16.msra.mxu0 %v500
        %891 = vmatprep.subr.bf16.mxu0 %v505
        %892 = vmatpush1.bf16.msra.mxu0 %v504
        %893 = vmatprep.subr.bf16.mxu0 %v509
        %894 = vmatpush1.bf16.msra.mxu0 %v508
        %895 = vmatprep.subr.bf16.mxu0 %v513
        %896 = vmatpush1.bf16.msra.mxu0 %v512
        %897 = vmatprep.subr.bf16.mxu0 %v517
        %898 = vmatpush1.bf16.msra.mxu0 %v516
        %899 = vmatprep.subr.bf16.mxu0 %v521
        %900 = vmatpush1.bf16.msra.mxu0 %v520
        %901 = vmatprep.subr.bf16.mxu0 %v525
        %902 = vmatpush1.bf16.msra.mxu0 %v524
        %903 = vmatprep.subr.bf16.mxu0 %v529
        %904 = vmatpush1.bf16.msra.mxu0 %v528
        %905 = vmatprep.subr.bf16.mxu0 %v533
        %906 = vmatpush1.bf16.msra.mxu0 %v532
        %907 = vmatprep.subr.bf16.mxu0 %v537
        %908 = vmatpush1.bf16.msra.mxu0 %v536
        %909 = vmatprep.subr.bf16.mxu0 %v541
        %910 = vmatpush1.bf16.msra.mxu0 %v540
        %911 = vmatprep.subr.bf16.mxu0 %v545
        %912 = vmatpush1.bf16.msra.mxu0 %v544
        %913 = vmatprep.subr.bf16.mxu0 %v549
        %914 = vmatpush1.bf16.msra.mxu0 %v548
        %915 = vmatprep.mubr.bf16.mxu0 %v289
        %916 = vmatmul.mubr.bf16.gmra.mrb[0].mxu0 %v288
        %v917 = vpop.f32.mrb[0].mxu0
        %v918 = vadd.f32 %v877, %v917
        %v919 = vpop.f32.mrb[0].mxu0
        %v920 = vadd.f32 %v879, %v919
        %v921 = vpop.f32.mrb[0].mxu0
        %v922 = vpop.f32.mrb[0].mxu0
        %923 = vdwg.mxu0
        %924 = vmatprep.subr.bf16.mxu0 %v553
        %925 = vmatpush1.bf16.msra.mxu0 %v552
        %926 = vmatprep.subr.bf16.mxu0 %v557
        %927 = vmatpush1.bf16.msra.mxu0 %v556
        %928 = vmatprep.subr.bf16.mxu0 %v561
        %929 = vmatpush1.bf16.msra.mxu0 %v560
        %930 = vmatprep.subr.bf16.mxu0 %v565
        %931 = vmatpush1.bf16.msra.mxu0 %v564
        %932 = vmatprep.subr.bf16.mxu0 %v569
        %933 = vmatpush1.bf16.msra.mxu0 %v568
        %934 = vmatprep.subr.bf16.mxu0 %v573
        %935 = vmatpush1.bf16.msra.mxu0 %v572
        %936 = vmatprep.subr.bf16.mxu0 %v577
        %937 = vmatpush1.bf16.msra.mxu0 %v576
        %938 = vmatprep.subr.bf16.mxu0 %v581
        %939 = vmatpush1.bf16.msra.mxu0 %v580
        %940 = vmatprep.subr.bf16.mxu0 %v585
        %941 = vmatpush1.bf16.msra.mxu0 %v584
        %942 = vmatprep.subr.bf16.mxu0 %v589
        %943 = vmatpush1.bf16.msra.mxu0 %v588
        %944 = vmatprep.subr.bf16.mxu0 %v593
        %945 = vmatpush1.bf16.msra.mxu0 %v592
        %946 = vmatprep.subr.bf16.mxu0 %v597
        %947 = vmatpush1.bf16.msra.mxu0 %v596
        %948 = vmatprep.subr.bf16.mxu0 %v601
        %949 = vmatpush1.bf16.msra.mxu0 %v600
        %950 = vmatprep.subr.bf16.mxu0 %v605
        %951 = vmatpush1.bf16.msra.mxu0 %v604
        %952 = vmatprep.subr.bf16.mxu0 %v609
        %953 = vmatpush1.bf16.msra.mxu0 %v608
        %954 = vmatprep.subr.bf16.mxu0 %v613
        %955 = vmatpush1.bf16.msra.mxu0 %v612
        %956 = vmatprep.mubr.bf16.mxu0 %v291
        %957 = vmatmul.mubr.bf16.gmra.mrb[0].mxu0 %v290
        %v958 = vpop.f32.mrb[0].mxu0
        %v959 = vadd.f32 %v918, %v958
        %v960 = vpop.f32.mrb[0].mxu0
        %v961 = vadd.f32 %v920, %v960
        %v962 = vpop.f32.mrb[0].mxu0
        %v963 = vpop.f32.mrb[0].mxu0
        %964 = vdwg.mxu0
        %965 = vmatprep.subr.bf16.mxu0 %v617
        %966 = vmatpush1.bf16.msra.mxu0 %v616
        %967 = vmatprep.subr.bf16.mxu0 %v621
        %968 = vmatpush1.bf16.msra.mxu0 %v620
        %969 = vmatprep.subr.bf16.mxu0 %v625
        %970 = vmatpush1.bf16.msra.mxu0 %v624
        %971 = vmatprep.subr.bf16.mxu0 %v629
        %972 = vmatpush1.bf16.msra.mxu0 %v628
        %973 = vmatprep.subr.bf16.mxu0 %v633
        %974 = vmatpush1.bf16.msra.mxu0 %v632
        %975 = vmatprep.subr.bf16.mxu0 %v637
        %976 = vmatpush1.bf16.msra.mxu0 %v636
        %977 = vmatprep.subr.bf16.mxu0 %v641
        %978 = vmatpush1.bf16.msra.mxu0 %v640
        %979 = vmatprep.subr.bf16.mxu0 %v645
        %980 = vmatpush1.bf16.msra.mxu0 %v644
        %981 = vmatprep.subr.bf16.mxu0 %v649
        %982 = vmatpush1.bf16.msra.mxu0 %v648
        %983 = vmatprep.subr.bf16.mxu0 %v653
        %984 = vmatpush1.bf16.msra.mxu0 %v652
        %985 = vmatprep.subr.bf16.mxu0 %v657
        %986 = vmatpush1.bf16.msra.mxu0 %v656
        %987 = vmatprep.subr.bf16.mxu0 %v661
        %988 = vmatpush1.bf16.msra.mxu0 %v660
        %989 = vmatprep.subr.bf16.mxu0 %v665
        %990 = vmatpush1.bf16.msra.mxu0 %v664
        %991 = vmatprep.subr.bf16.mxu0 %v669
        %992 = vmatpush1.bf16.msra.mxu0 %v668
        %993 = vmatprep.subr.bf16.mxu0 %v673
        %994 = vmatpush1.bf16.msra.mxu0 %v672
        %995 = vmatprep.subr.bf16.mxu0 %v677
        %996 = vmatpush1.bf16.msra.mxu0 %v676
        %997 = vmatprep.mubr.bf16.mxu0 %v293
        %998 = vmatmul.mubr.bf16.gmra.mrb[0].mxu0 %v292
        %v999 = vpop.f32.mrb[0].mxu0
        %v1000 = vadd.f32 %v959, %v999
        %v1001 = vpop.f32.mrb[0].mxu0
        %v1002 = vadd.f32 %v961, %v1001
        %v1003 = vpop.f32.mrb[0].mxu0
        %v1004 = vpop.f32.mrb[0].mxu0
        %1005 = vdwg.mxu0
        %v1006 = vld [vmem:[%s209] ss:$2 sm:$0xf]
        %v1008 = vlaneseq
        %v1009 = vshrl.u32 %v1008, 7
        %v1010 = vsub.s32 0, %v1009
        %v1011 = vrot.slane %v1006, %v1010
        %v1012 = vlaneseq
        %v1013 = vshrl.u32 %v1012, 7
        %v1014 = vsub.s32 1, %v1013
        %v1015 = vrot.slane %v1006, %v1014
        %v1016 = vlaneseq
        %v1017 = vshrl.u32 %v1016, 7
        %v1018 = vsub.s32 2, %v1017
        %v1019 = vrot.slane %v1006, %v1018
        %v1020 = vlaneseq
        %v1021 = vshrl.u32 %v1020, 7
        %v1022 = vsub.s32 3, %v1021
        %v1023 = vrot.slane %v1006, %v1022
        %v1028 = vmul.f32 %v836, %v1011
        %v1029 = vmul.f32 %v838, %v1015
        %v1030 = vmul.f32 %v1000, %v1019
        %v1031 = vmul.f32 %v1002, %v1023
        %s1032 = scalar_lea.vmem %s209, 1 [#allocation7]
        %v1033 = vld [vmem:[%s1032] ss:$2 sm:$0xf]
        %v1035 = vlaneseq
        %v1036 = vshrl.u32 %v1035, 7
        %v1037 = vsub.s32 0, %v1036
        %v1038 = vrot.slane %v1033, %v1037
        %v1039 = vlaneseq
        %v1040 = vshrl.u32 %v1039, 7
        %v1041 = vsub.s32 1, %v1040
        %v1042 = vrot.slane %v1033, %v1041
        %v1043 = vlaneseq
        %v1044 = vshrl.u32 %v1043, 7
        %v1045 = vsub.s32 2, %v1044
        %v1046 = vrot.slane %v1033, %v1045
        %v1047 = vlaneseq
        %v1048 = vshrl.u32 %v1047, 7
        %v1049 = vsub.s32 3, %v1048
        %v1050 = vrot.slane %v1033, %v1049
        %v1055 = vadd.f32 %v1028, %v1038
        %v1056 = vadd.f32 %v1029, %v1042
        %v1057 = vadd.f32 %v1030, %v1046
        %v1058 = vadd.f32 %v1031, %v1050
        %v1063 = vcombine.low %v1055, %v1056
        %v1064 = vcombine.low %v1057, %v1058
        %v1066 = vunpack.c.l.s4 1983009808
        %v1067 = vunpack.c.0.s8 %v1066
        %v1068 = vlaneseq
        %v1069 = vshrl.u32 %v1068, 7
        %v1070 = vsub.s32 %v1067, %v1069
        %v1071 = vrot.slane %v1063, %v1070
        %v1073 = vunpack.c.l.s4 1983009808
        %v1074 = vunpack.c.0.s8 %v1073
        %v1075 = vlaneseq
        %v1076 = vshrl.u32 %v1075, 7
        %v1077 = vsub.s32 %v1074, %v1076
        %v1078 = vrot.slane %v1064, %v1077
        %v1079 = vcombine.low %v1071, %v1078
        %1081 = vst [vmem:[%s236] sm:$0xff] %v1079
        %s1082 = sand.u32 %s102, 1
        %s1083 = scalar_lea.sflag [#allocation4], %s1082
        %s1084 = sand.u32 %s102, 1
        %s1085 = smul.addr %s1084, 8
        %s1086 = scalar_lea.vmem [#allocation8], %s1085
        // Predicated region
        $region45: #{denoising_diffusion_linear.1} parent=31 // pred_check
          %p1087 = pneg %p112
        $region46: #{denoising_diffusion_linear.1} parent=31 // pred_check_branch
          %1089 = sbr.rel (%p1087) target = $region48
        $region47: #{denoising_diffusion_linear.1} parent=31 // pred_region
          %s1090 = smul.u32 4, %s21
          %s1092 = ssub.s32 128, 128
          %1093 = vsyncadd %s1083, %s1092
          %s1094 = smul.addr %s1090, 32
          %s1095 = scalar_lea.hbm %s3, %s1094
          %s1097 = sshll.u32 %s1086, 4
          %s1098 = int_to_ptr.vmem [resolvable:$true] %s1097
          %1100 = dma.vmem_to_hbm [thread:$0]  %s1098, 128, %s1095, %s1083
        $region48: #{denoising_diffusion_linear.1} parent=31 // pred_fallthru
          _
      $region32: #{denoising_diffusion_linear.1} parent=5 // pred_fallthru
        _
      %p1101 = scmp.le.s32.totalorder 2, %s16
      // Predicated region
      $region49: #{denoising_diffusion_linear.1} parent=5 // pred_check
        %p1102 = pneg %p1101
      $region50: #{denoising_diffusion_linear.1} parent=5 // pred_check_branch
        %1104 = sbr.rel (%p1102) target = $region52
      $region51: #{denoising_diffusion_linear.1} parent=5 // pred_region
        %s1105 = ssub.s32 %s16, 2
        // Predicated region
        $region53: #{denoising_diffusion_linear.1} parent=51 // pred_check
          %p1106 = pneg %p118
        $region54: #{denoising_diffusion_linear.1} parent=51 // pred_check_branch
          %1108 = sbr.rel (%p1106) target = $region56
        $region55: #{denoising_diffusion_linear.1} parent=51 // pred_region
          %s1109 = sand.u32 %s103, 1
          %s1110 = scalar_lea.sflag [#allocation4], %s1109
          %s1111 = sand.u32 %s103, 1
          %s1112 = smul.addr %s1111, 8
          %s1113 = scalar_lea.vmem [#allocation8], %s1112
          %1114 = dma.done %s1110, 128
        $region56: #{denoising_diffusion_linear.1} parent=51 // pred_fallthru
          _
      $region52: #{denoising_diffusion_linear.1} parent=5 // pred_fallthru
        _
    $region6: #{denoising_diffusion_linear.1} parent=1 // loop_footer
      %s20 = sadd.s32 1, %s16
    $region7: #{denoising_diffusion_linear.1} parent=1 // loop_footer_branch
      %15 = sbr.rel target = $region3
    $region8: #{denoising_diffusion_linear.1} parent=1 // loop_exit
      _
    %1115 = vsyncpa [#allocation3], 1
    %s1116 = scalar_lea.sflag [#allocation3], 1
    %1117 = vsyncpa %s1116, 1
    %1118 = vsyncpa [#allocation6], 1
    %s1119 = scalar_lea.sflag [#allocation6], 1
    %1120 = vsyncpa %s1119, 1
    %1121 = vsyncpa [#allocation4], 1
    %s1122 = scalar_lea.sflag [#allocation4], 1
    %1123 = vsyncpa %s1122, 1

</llo_original>
